<compile_context>
chip_gen: v7x
topology: tpu7x:2x2x1
jax: 0.10.0
libtpu: 0.0.40
codegen_flags: <defaults>
</compile_context>

<pallas_src>
import math
import random

import jax
import jax.numpy as jnp
from jax.experimental import pallas as pl
from jax.experimental.pallas import tpu as pltpu


def _bilinear_matrix(in_size: int, out_size: int, dtype=jnp.float32) -> jnp.ndarray:
    """M (out_size, in_size) s.t. y = M @ x reproduces PyTorch bilinear
    interpolation (align_corners=False) along one axis."""
    scale = in_size / out_size
    dst = jnp.arange(out_size, dtype=jnp.float32)
    src = (dst + 0.5) * scale - 0.5
    src = jnp.maximum(src, 0.0)                 # PyTorch clamps below at 0
    x0 = jnp.floor(src).astype(jnp.int32)
    x0 = jnp.clip(x0, 0, in_size - 1)
    x1 = jnp.minimum(x0 + 1, in_size - 1)
    lam = src - x0.astype(jnp.float32)
    rows = jnp.arange(out_size)
    m = jnp.zeros((out_size, in_size), jnp.float32)
    m = m.at[rows, x0].add(1.0 - lam)
    m = m.at[rows, x1].add(lam)                 # edge: x0 == x1 -> weight sums to 1
    return m.astype(dtype)


def _resize_kernel(wwt_ref, wh_ref, x_ref, o_ref):
    tb, h, w = x_ref.shape
    new_w = wwt_ref.shape[1]
    new_h = wh_ref.shape[0]

    # W-axis contraction as one large-M MXU matmul.
    # Collapsing leading dims keeps the lane dim (W) unchanged -> layout-safe.
    x2 = x_ref[...].reshape(tb * h, w)                              # (tb*h, w)
    t1 = jnp.dot(x2, wwt_ref[...], preferred_element_type=jnp.float32)  # (tb*h, new_w)
    t1 = t1.reshape(tb, h, new_w).astype(wh_ref.dtype)              # (tb, h, new_w)

    # H-axis contraction as a batched matmul producing (tb, new_h, new_w)
    # directly (no transposes). Wh is tiny; the broadcast is cheap and hoisted.
    whb = jnp.broadcast_to(wh_ref[...], (tb, new_h, h))             # (tb, new_h, h)
    out = jnp.einsum("boh,bhp->bop", whb, t1,
                     preferred_element_type=jnp.float32)            # (tb, new_h, new_w)
    o_ref[...] = out.astype(o_ref.dtype)


def _vmem_capacity_bytes() -> int:
    try:
        return int(pltpu.get_tpu_info().vmem_capacity_bytes)
    except Exception:
        return 64 * 1024 * 1024  # conservative default (v7x per-TC VMEM)


def _choose_batch_tile(n, h, w, new_h, new_w, itemsize, vmem_cap) -> int:
    """Largest batch tile that fits comfortably in VMEM with double buffering."""
    budget = vmem_cap // 4  # headroom for double-buffering + compiler temps
    per_slice = (
        2 * h * w * itemsize                 # double-buffered input block
        + 2 * new_h * new_w * itemsize       # double-buffered output block
        + (h * new_w + new_h * new_w) * 4    # f32 intermediates
        + new_h * h * itemsize               # broadcast Wh copy
    )
    tb = max(1, min(n, budget // max(per_slice, 1)))
    if n >= 2:
        tb = min(tb, pl.cdiv(n, 2))          # keep >=2 grid steps (v7x megacore)
    align = max(1, 256 // max(h, 1))         # prefer tb*h a multiple of MXU M dim
    if tb >= align:
        tb = (tb // align) * align
    return int(max(1, tb))


def random_short_side_scale(x: jnp.ndarray,
                            min_size: int,
                            max_size: int,
                            rng: random.Random) -> jnp.ndarray:
    """x: (C, T, H, W). Returns (C, T, new_h, new_w)."""
    # TODO(synk): size pick + output shape are resolved on host — data-dependent
    # shapes cannot live inside a Pallas kernel.
    size = rng.randint(min_size, max_size)
    c, t, h, w = x.shape
    if w < h:
        new_h = int(math.floor(h / w * size))
        new_w = size
    else:
        new_h = size
        new_w = int(math.floor(w / h * size))

    # Keep MXU operands in the input dtype (no in-kernel upcast): bf16/f16 feed
    # the MXU directly with f32 accumulation; otherwise stay in f32.
    mat_dtype = x.dtype if x.dtype in (jnp.bfloat16, jnp.float16) else jnp.float32
    wh = _bilinear_matrix(h, new_h, mat_dtype)        # (new_h, H)
    wwt = _bilinear_matrix(w, new_w, mat_dtype).T     # (W, new_w)

    n = c * t
    x_flat = x.reshape(n, h, w)

    vmem_cap = _vmem_capacity_bytes()
    tb = _choose_batch_tile(n, h, w, new_h, new_w, x.dtype.itemsize, vmem_cap)
    grid = (pl.cdiv(n, tb),)

    out_flat = pl.pallas_call(
        _resize_kernel,
        out_shape=jax.ShapeDtypeStruct((n, new_h, new_w), x.dtype),
        grid_spec=pltpu.PrefetchScalarGridSpec(
            num_scalar_prefetch=0,
            grid=grid,
            in_specs=[
                pl.BlockSpec((w, new_w), lambda i: (0, 0)),      # Ww^T (resident)
                pl.BlockSpec((new_h, h), lambda i: (0, 0)),      # Wh   (resident)
                pl.BlockSpec((tb, h, w), lambda i: (i, 0, 0)),   # batched x tile
            ],
            out_specs=pl.BlockSpec((tb, new_h, new_w), lambda i: (i, 0, 0)),
        ),
        compiler_params=pltpu.CompilerParams(
            dimension_semantics=("parallel",),
            vmem_limit_bytes=int(min(vmem_cap, 128 * 1024 * 1024) * 3 // 4),
        ),
    )(wwt, wh, x_flat)

    return out_flat.reshape(c, t, new_h, new_w)


if __name__ == "__main__":
    # Deterministic random size pick (stands in for Python's random.randint).
    rng = random.Random(0)

    # Small, module-consistent input: (C=3, T=4, H=16, W=24)
    key = jax.random.PRNGKey(0)
    x = jax.random.normal(key, (3, 4, 16, 24), dtype=jnp.float32)

    min_size, max_size = 8, 12
    y = random_short_side_scale(x, min_size, max_size, rng)
    y = jax.block_until_ready(y)

    # Reference check with the same interpolation matrices in plain JAX.
    size = random.Random(0).randint(min_size, max_size)
    c, t, h, w = x.shape
    if w < h:
        new_h, new_w = int(math.floor(h / w * size)), size
    else:
        new_h, new_w = size, int(math.floor(w / h * size))
    wh = _bilinear_matrix(h, new_h)
    ww = _bilinear_matrix(w, new_w)
    ref = jnp.einsum("oh,cthw,pw->ctop", wh, x, ww)
    assert y.shape == (c, t, new_h, new_w), y.shape
    assert jnp.allclose(y, ref, atol=1e-5, rtol=1e-5), float(jnp.max(jnp.abs(y - ref)))

    print("KERNEL_OK")
</pallas_src>

<mosaic_0001>
module attributes {stable_mosaic.version = 11 : i64} {
  func.func @_resize_kernel(%arg0: i32, %arg1: memref<24x16xf32, #tpu.memory_space<vmem>>, %arg2: memref<11x16xf32, #tpu.memory_space<vmem>>, %arg3: memref<6x16x24xf32, #tpu.memory_space<vmem>>, %arg4: memref<6x11x16xf32, #tpu.memory_space<vmem>>) attributes {dimension_semantics = [#tpu.dimension_semantics<parallel>], iteration_bounds = array<i64: 2>, scalar_prefetch = 0 : i64, scratch_operands = 0 : i64, tpu.core_type = #tpu.core_type<tc>, window_params = [{pipeline_mode = #tpu.pipeline_mode<synchronous>, transform_indices = @transform_0, window_bounds = array<i64: 24, 16>}, {pipeline_mode = #tpu.pipeline_mode<synchronous>, transform_indices = @transform_1, window_bounds = array<i64: 11, 16>}, {transform_indices = @transform_2, window_bounds = array<i64: 6, 16, 24>}, {transform_indices = @transform_3, window_bounds = array<i64: 6, 11, 16>}]} {
    %c0 = arith.constant 0 : index
    %c0_0 = arith.constant 0 : index
    %c0_1 = arith.constant 0 : index
    %0 = vector.load %arg3[%c0, %c0_0, %c0_1] : memref<6x16x24xf32, #tpu.memory_space<vmem>>, vector<6x16x24xf32>
    %1 = vector.shape_cast %0 : vector<6x16x24xf32> to vector<96x24xf32>
    %c0_2 = arith.constant 0 : index
    %c0_3 = arith.constant 0 : index
    %2 = vector.load %arg1[%c0_2, %c0_3] : memref<24x16xf32, #tpu.memory_space<vmem>>, vector<24x16xf32>
    %cst = arith.constant dense<0.000000e+00> : vector<96x16xf32>
    %3 = tpu.matmul %1, %2, %cst {dimension_numbers = #tpu.dot_dimension_numbers<[1], [0], [0], [1], [0, 0, 1, 1], [], []>} : vector<96x24xf32>, vector<24x16xf32>, vector<96x16xf32> -> vector<96x16xf32>
    %4 = vector.shape_cast %3 : vector<96x16xf32> to vector<6x16x16xf32>
    %c0_4 = arith.constant 0 : index
    %c0_5 = arith.constant 0 : index
    %5 = vector.load %arg2[%c0_4, %c0_5] : memref<11x16xf32, #tpu.memory_space<vmem>>, vector<11x16xf32>
    %6 = vector.shape_cast %5 : vector<11x16xf32> to vector<1x11x16xf32>
    %7 = vector.broadcast %6 : vector<1x11x16xf32> to vector<6x11x16xf32>
    "tpu.trace_start"() <{level = 10 : i32, message = "boh,bhp->bop"}> : () -> ()
    %cst_6 = arith.constant dense<0.000000e+00> : vector<6x11x16xf32>
    %8 = tpu.matmul %7, %4, %cst_6 {dimension_numbers = #tpu.dot_dimension_numbers<[2], [1], [1], [2], [0, 0, 0, 1, 1, 2], [0], [0]>} : vector<6x11x16xf32>, vector<6x16x16xf32>, vector<6x11x16xf32> -> vector<6x11x16xf32>
    "tpu.trace_stop"() : () -> ()
    %c0_7 = arith.constant 0 : index
    %c0_8 = arith.constant 0 : index
    %c0_9 = arith.constant 0 : index
    %9 = vector.load %arg4[%c0_7, %c0_8, %c0_9] : memref<6x11x16xf32, #tpu.memory_space<vmem>>, vector<6x11x16xf32>
    tpu.vector_store %arg4[%c0_7, %c0_8, %c0_9], %8 {strides = array<i32>} : memref<6x11x16xf32, #tpu.memory_space<vmem>>, vector<6x11x16xf32>,
    return
  }
  func.func @transform_0(%arg0: i32) -> (i32, i32) {
    %c0_i32 = arith.constant 0 : i32
    %c0_i32_0 = arith.constant 0 : i32
    %c0_i32_1 = arith.constant 0 : i32
    return %c0_i32, %c0_i32_0 : i32, i32
  }
  func.func @transform_1(%arg0: i32) -> (i32, i32) {
    %c0_i32 = arith.constant 0 : i32
    %c0_i32_0 = arith.constant 0 : i32
    %c0_i32_1 = arith.constant 0 : i32
    return %c0_i32, %c0_i32_0 : i32, i32
  }
  func.func @transform_2(%arg0: i32) -> (i32, i32, i32) {
    %c0_i32 = arith.constant 0 : i32
    %c0_i32_0 = arith.constant 0 : i32
    %c0_i32_1 = arith.constant 0 : i32
    return %arg0, %c0_i32, %c0_i32_0 : i32, i32, i32
  }
  func.func @transform_3(%arg0: i32) -> (i32, i32, i32) {
    %c0_i32 = arith.constant 0 : i32
    %c0_i32_0 = arith.constant 0 : i32
    %c0_i32_1 = arith.constant 0 : i32
    return %arg0, %c0_i32, %c0_i32_0 : i32, i32, i32
  }
}

</mosaic_0001>

<llo_original>
// kernel: tpu_custom_call.1
$region0: #{tpu_custom_call.1}
  #allocation0 [shape = 'u32[]', space=smem, size = 0x4, offset = 0x4, fixed_abs, tag = 'smem constant byte address 0x4 - core index']
  #allocation1 [shape = 'u32[144,128]{1,0:T(1,128)}', space=vmem, size = 0x12000, scoped, tag = 'internal scratch']
  %s0 = inlined_call_operand.vmem [shape: f32[24,16], index: 0, kind: input, shape index: {}]
  %s1 = inlined_call_operand.vmem [shape: f32[11,16], index: 1, kind: input, shape index: {}]
  %s2 = inlined_call_operand.hbm [shape: f32[12,16,24], index: 2, kind: input, shape index: {}]
  %s3 = inlined_call_operand.vmem [shape: f32[12,11,16], index: 3, kind: output, shape index: {}]
  %s4 = sld [smem:[#allocation0]]
  $region49: #{tpu_custom_call.1} parent=0
    _
  %s6 = ssub.s32 1, %s4
  %s7 = scalar_select 0, %s6, %s4
  $region1: #{tpu_custom_call.1} parent=0
    #allocation2 [shape = 'u8[98304]{0}', space=vmem, size = 0x18000, scoped, tag = 'input window, operand 2']
    #allocation3 [shape = 's32[2]{0}', space=sflag, size = 0x8, scoped, tag = 'scoped memory for tpu_custom_call.1']
    %8 = vsyncpa [#allocation3], 0
    %s9 = scalar_lea.sflag [#allocation3], 1
    %10 = vsyncpa %s9, 0
    loop: start=0, step=1, limit=4
    $region2: #{tpu_custom_call.1} parent=1 // loop_pre_header
      _
    $region3: #{tpu_custom_call.1} parent=1 // loop_header
      %s12 = sphi 0, %s16
      %p13 = scmp.ge.s32.totalorder %s12, 4
      %s20 = sphi 0, %s20
      %s22 = sphi 0, %s20
      %s23 = sphi 0, %s22
      %s37 = sphi 0, %s23
      %s41 = sphi 0, %s41
      %s43 = sphi 0, %s41
      %s44 = sphi 0, %s43
      %s58 = sphi 0, %s44
      %s64 = sphi 0, %s66
      %s67 = sphi 0, %s64
      %s68 = sphi 0, %s67
      %s84 = sphi 0, %s68
      %s90 = sphi 0, %s92
      %s93 = sphi 0, %s90
      %s94 = sphi 0, %s93
      %s110 = sphi 0, %s94
    $region4: #{tpu_custom_call.1} parent=1 // loop_header_branch
      %15 = sbr.rel (%p13) target = $region8
    $region5: #{tpu_custom_call.1} parent=1 // loop_body
      %s17 = ssub.s32 %s12, 1
      %s18 = ssub.s32 %s12, 2
      %s19 = sadd.s32 %s12, 1
      %s21 = sadd.s32 %s20, 1
      %p24 = scmp.eq.s32.totalorder %s12, 1
      %p25 = scmp.ne.s32.totalorder %s20, %s22
      %p26 = scmp.eq.s32.totalorder %s12, 0
      %p27 = por %p25, %p26
      %p28 = scmp.ne.s32.totalorder %s20, %s22
      %p29 = scmp.eq.s32.totalorder %s17, 1
      %p30 = por %p28, %p29
      %p31 = scmp.ne.s32.totalorder %s22, %s23
      %p32 = scmp.eq.s32.totalorder %s17, 0
      %p33 = por %p31, %p32
      %p34 = scmp.ne.s32.totalorder %s22, %s23
      %p35 = scmp.eq.s32.totalorder %s18, 1
      %p36 = por %p34, %p35
      %p38 = scmp.ne.s32.totalorder %s23, %s37
      %p39 = scmp.eq.s32.totalorder %s18, 0
      %p40 = por %p38, %p39
      %s42 = sadd.s32 %s41, 1
      %p45 = scmp.eq.s32.totalorder %s12, 1
      %p46 = scmp.ne.s32.totalorder %s41, %s43
      %p47 = scmp.eq.s32.totalorder %s12, 0
      %p48 = por %p46, %p47
      %p49 = scmp.ne.s32.totalorder %s41, %s43
      %p50 = scmp.eq.s32.totalorder %s17, 1
      %p51 = por %p49, %p50
      %p52 = scmp.ne.s32.totalorder %s43, %s44
      %p53 = scmp.eq.s32.totalorder %s17, 0
      %p54 = por %p52, %p53
      %p55 = scmp.ne.s32.totalorder %s43, %s44
      %p56 = scmp.eq.s32.totalorder %s18, 1
      %p57 = por %p55, %p56
      %p59 = scmp.ne.s32.totalorder %s44, %s58
      %p60 = scmp.eq.s32.totalorder %s18, 0
      %p61 = por %p59, %p60
      %s62 = ssub.s32 %s12, %s19
      %p63 = scmp.eq.s32.totalorder %s62, 0
      %s65 = sadd.s32 %s64, 1
      %s66 = scalar_select %p63, %s64, %s65
      %p69 = pneg %p63
      %p70 = scmp.eq.s32.totalorder %s12, 1
      %p71 = por %p69, %p70
      %p72 = scmp.ne.s32.totalorder %s64, %s67
      %p73 = scmp.eq.s32.totalorder %s12, 0
      %p74 = por %p72, %p73
      %p75 = scmp.ne.s32.totalorder %s64, %s67
      %p76 = scmp.eq.s32.totalorder %s17, 1
      %p77 = por %p75, %p76
      %p78 = scmp.ne.s32.totalorder %s67, %s68
      %p79 = scmp.eq.s32.totalorder %s17, 0
      %p80 = por %p78, %p79
      %p81 = scmp.ne.s32.totalorder %s67, %s68
      %p82 = scmp.eq.s32.totalorder %s18, 1
      %p83 = por %p81, %p82
      %p85 = scmp.ne.s32.totalorder %s68, %s84
      %p86 = scmp.eq.s32.totalorder %s18, 0
      %p87 = por %p85, %p86
      %s88 = ssub.s32 %s12, %s19
      %p89 = scmp.eq.s32.totalorder %s88, 0
      %s91 = sadd.s32 %s90, 1
      %s92 = scalar_select %p89, %s90, %s91
      %p95 = pneg %p89
      %p96 = scmp.eq.s32.totalorder %s12, 1
      %p97 = por %p95, %p96
      %p98 = scmp.ne.s32.totalorder %s90, %s93
      %p99 = scmp.eq.s32.totalorder %s12, 0
      %p100 = por %p98, %p99
      %p101 = scmp.ne.s32.totalorder %s90, %s93
      %p102 = scmp.eq.s32.totalorder %s17, 1
      %p103 = por %p101, %p102
      %p104 = scmp.ne.s32.totalorder %s93, %s94
      %p105 = scmp.eq.s32.totalorder %s17, 0
      %p106 = por %p104, %p105
      %p107 = scmp.ne.s32.totalorder %s93, %s94
      %p108 = scmp.eq.s32.totalorder %s18, 1
      %p109 = por %p107, %p108
      %p111 = scmp.ne.s32.totalorder %s94, %s110
      %p112 = scmp.eq.s32.totalorder %s18, 0
      %p113 = por %p111, %p112
      %p114 = scmp.le.s32.totalorder 1, %s12
      %p115 = scmp.lt.s32.totalorder %s12, 3
      %p116 = pnand %p114, %p115
      %p117 = pneg %p116
      // Predicated region
      $region9: #{tpu_custom_call.1} parent=5 // pred_check
        _
      $region10: #{tpu_custom_call.1} parent=5 // pred_check_branch
        %119 = sbr.rel (%p116) target = $region12
      $region11: #{tpu_custom_call.1} parent=5 // pred_region
        %s120 = ssub.s32 %s12, 1
        // Predicated region
        $region13: #{tpu_custom_call.1} parent=11 // pred_check
          %p121 = pneg %p33
        $region14: #{tpu_custom_call.1} parent=11 // pred_check_branch
          %123 = sbr.rel (%p121) target = $region16
        $region15: #{tpu_custom_call.1} parent=11 // pred_region
          _
        $region16: #{tpu_custom_call.1} parent=11 // pred_fallthru
          _
        // Predicated region
        $region17: #{tpu_custom_call.1} parent=11 // pred_check
          %p124 = pneg %p54
        $region18: #{tpu_custom_call.1} parent=11 // pred_check_branch
          %126 = sbr.rel (%p124) target = $region20
        $region19: #{tpu_custom_call.1} parent=11 // pred_region
          _
        $region20: #{tpu_custom_call.1} parent=11 // pred_fallthru
          _
      $region12: #{tpu_custom_call.1} parent=5 // pred_fallthru
        _
      %p127 = scmp.lt.s32.totalorder %s12, 2
      // Predicated region
      $region21: #{tpu_custom_call.1} parent=5 // pred_check
        %p128 = pneg %p127
      $region22: #{tpu_custom_call.1} parent=5 // pred_check_branch
        %130 = sbr.rel (%p128) target = $region24
      $region23: #{tpu_custom_call.1} parent=5 // pred_region
        // Predicated region
        $region25: #{tpu_custom_call.1} parent=23 // pred_check
          %p131 = pneg %p74
        $region26: #{tpu_custom_call.1} parent=23 // pred_check_branch
          %133 = sbr.rel (%p131) target = $region28
        $region27: #{tpu_custom_call.1} parent=23 // pred_region
          %s134 = sand.u32 %s64, 1
          %s135 = scalar_lea.sflag [#allocation3], %s134
          %s136 = sand.u32 %s64, 1
          %s137 = smul.addr %s136, 96
          %s138 = scalar_lea.vmem [#allocation2], %s137
          %s139 = smul.u32 6, %s12
          %s141 = ssub.s32 1536, 1536
          %142 = vsyncadd %s135, %s141
          %s143 = smul.addr %s139, 2
          %s144 = smul.addr %s143, 128
          %s145 = scalar_lea.hbm %s2, %s144
          %s146 = sshll.u32 %s138, 4
          %s147 = int_to_ptr.vmem [resolvable:$true] %s146
          %152 = dma.hbm_to_vmem [thread:$0]  %s145, 1536, %s147, %s135, 128, 128, 8
        $region28: #{tpu_custom_call.1} parent=23 // pred_fallthru
          _
      $region24: #{tpu_custom_call.1} parent=5 // pred_fallthru
        _
      %p153 = scmp.le.s32.totalorder 1, %s12
      %p154 = scmp.lt.s32.totalorder %s12, 3
      %p155 = pnand %p153, %p154
      %p156 = pneg %p155
      // Predicated region
      $region29: #{tpu_custom_call.1} parent=5 // pred_check
        _
      $region30: #{tpu_custom_call.1} parent=5 // pred_check_branch
        %158 = sbr.rel (%p155) target = $region32
      $region31: #{tpu_custom_call.1} parent=5 // pred_region
        %s159 = ssub.s32 %s12, 1
        %s160 = sand.u32 %s67, 1
        %s161 = scalar_lea.sflag [#allocation3], %s160
        %s162 = sand.u32 %s67, 1
        %s163 = smul.addr %s162, 96
        %s164 = scalar_lea.vmem [#allocation2], %s163
        // Predicated region
        $region33: #{tpu_custom_call.1} parent=31 // pred_check
          %p165 = pneg %p80
        $region34: #{tpu_custom_call.1} parent=31 // pred_check_branch
          %167 = sbr.rel (%p165) target = $region36
        $region35: #{tpu_custom_call.1} parent=31 // pred_region
          %168 = dma.done %s161, 1536
        $region36: #{tpu_custom_call.1} parent=31 // pred_fallthru
          _
        %p169 = pneg %p33
        %p170 = pneg %p30
        %p171 = pneg %p54
        %p172 = pneg %p51
        %s173 = sand.u32 %s67, 1
        %s174 = scalar_lea.sflag [#allocation3], %s173
        %s175 = sand.u32 %s67, 1
        %s176 = smul.addr %s175, 96
        %s177 = scalar_lea.vmem [#allocation2], %s176
        %p178 = pneg %p80
        %p179 = pneg %p77
        %p180 = pneg %p106
        %p181 = pneg %p103
        %s182 = smul.u32 6, %s17
        %p183 = scmp.lt.s32.totalorder %s182, 11
        %s184 = scalar_select %p183, %s182, 11
        %s185 = smul.addr %s184, 2
        %s186 = smul.addr %s185, 8
        %s187 = scalar_lea.vmem %s3, %s186
        %s188 = smul.u32 6, %s17
        %s189 = smul.u32 6, %s17
        %p190 = scmp.lt.s32.totalorder %s189, 11
        %s191 = scalar_select %p190, %s189, 11
        %s192 = smul.addr %s191, 2
        %s193 = smul.addr %s192, 8
        %s194 = scalar_lea.vmem %s3, %s193
        %s195 = smul.u32 6, %s17
        %v196 = vld [vmem:[%s164] sm:$0xff]
        %v197 = vld [vmem:[%s164 + $0x8] sm:$0xff]
        %v198 = vld [vmem:[%s164 + $0x10] sm:$0xff]
        %v199 = vld [vmem:[%s164 + $0x18] sm:$0xff]
        %v200 = vld [vmem:[%s164 + $0x20] sm:$0xff]
        %v201 = vld [vmem:[%s164 + $0x28] sm:$0xff]
        %v202 = vld [vmem:[%s164 + $0x30] sm:$0xff]
        %v203 = vld [vmem:[%s164 + $0x38] sm:$0xff]
        %v204 = vld [vmem:[%s164 + $0x40] sm:$0xff]
        %v205 = vld [vmem:[%s164 + $0x48] sm:$0xff]
        %v206 = vld [vmem:[%s164 + $0x50] sm:$0xff]
        %v207 = vld [vmem:[%s164 + $0x58] sm:$0xff]
        %v208 = vld [vmem:[%s0] sm:$0xff]
        %v209 = vld [vmem:[%s0 + $0x8] sm:$0xff]
        %v210 = vld [vmem:[%s0 + $0x10] sm:$0xff]
        %vm211 = vcmask 195584
        %v213 = vsel %vm211, %v196, 0
        %v216 = vsel %vm211, %v197, 0
        %v219 = vsel %vm211, %v198, 0
        %v222 = vsel %vm211, %v199, 0
        %v225 = vsel %vm211, %v200, 0
        %v228 = vsel %vm211, %v201, 0
        %v231 = vsel %vm211, %v202, 0
        %v234 = vsel %vm211, %v203, 0
        %v237 = vsel %vm211, %v204, 0
        %v240 = vsel %vm211, %v205, 0
        %v243 = vsel %vm211, %v206, 0
        %v246 = vsel %vm211, %v207, 0
        %248 = vmatprep.subr.mxu0 0.0
        %249 = vmatpush1.msra.mxu0 %v208
        %250 = vmatprep.subr.mxu0 0.0
        %251 = vmatpush1.msra.mxu0 %v209
        %252 = vmatprep.subr.mxu0 0.0
        %253 = vmatpush1.msra.mxu0 %v210
        %254 = vmatprep.subr.mxu0 0.0
        %255 = vmatpush1.msra.mxu0 0.0
        %256 = vmatprep.subr.mxu0 0.0
        %257 = vmatpush1.msra.mxu0 0.0
        %258 = vmatprep.subr.mxu0 0.0
        %259 = vmatpush1.msra.mxu0 0.0
        %260 = vmatprep.subr.mxu0 0.0
        %261 = vmatpush1.msra.mxu0 0.0
        %262 = vmatprep.subr.mxu0 0.0
        %263 = vmatpush1.msra.mxu0 0.0
        %264 = vmatprep.subr.mxu0 0.0
        %265 = vmatpush1.msra.mxu0 0.0
        %266 = vmatprep.subr.mxu0 0.0
        %267 = vmatpush1.msra.mxu0 0.0
        %268 = vmatprep.subr.mxu0 0.0
        %269 = vmatpush1.msra.mxu0 0.0
        %270 = vmatprep.subr.mxu0 0.0
        %271 = vmatpush1.msra.mxu0 0.0
        %272 = vmatprep.subr.mxu0 0.0
        %273 = vmatpush1.msra.mxu0 0.0
        %274 = vmatprep.subr.mxu0 0.0
        %275 = vmatpush1.msra.mxu0 0.0
        %276 = vmatprep.subr.mxu0 0.0
        %277 = vmatpush1.msra.mxu0 0.0
        %278 = vmatprep.subr.mxu0 0.0
        %279 = vmatpush1.msra.mxu0 0.0
        %280 = vmatprep.subr.mxu0 0.0
        %281 = vmatpush1.msra.mxu0 0.0
        %282 = vmatprep.subr.mxu0 0.0
        %283 = vmatpush1.msra.mxu0 0.0
        %284 = vmatprep.subr.mxu0 0.0
        %285 = vmatpush1.msra.mxu0 0.0
        %286 = vmatprep.subr.mxu0 0.0
        %287 = vmatpush1.msra.mxu0 0.0
        %288 = vmatprep.subr.mxu0 0.0
        %289 = vmatpush1.msra.mxu0 0.0
        %290 = vmatprep.subr.mxu0 0.0
        %291 = vmatpush1.msra.mxu0 0.0
        %292 = vmatprep.subr.mxu0 0.0
        %293 = vmatpush1.msra.mxu0 0.0
        %294 = vmatprep.subr.mxu0 0.0
        %295 = vmatpush1.msra.mxu0 0.0
        %296 = vmatprep.subr.mxu0 0.0
        %297 = vmatpush1.msra.mxu0 0.0
        %298 = vmatprep.subr.mxu0 0.0
        %299 = vmatpush1.msra.mxu0 0.0
        %300 = vmatprep.subr.mxu0 0.0
        %301 = vmatpush1.msra.mxu0 0.0
        %302 = vmatprep.subr.mxu0 0.0
        %303 = vmatpush1.msra.mxu0 0.0
        %304 = vmatprep.subr.mxu0 0.0
        %305 = vmatpush1.msra.mxu0 0.0
        %306 = vmatprep.subr.mxu0 0.0
        %307 = vmatpush1.msra.mxu0 0.0
        %308 = vmatprep.subr.mxu0 0.0
        %309 = vmatpush1.msra.mxu0 0.0
        %310 = vmatprep.subr.mxu0 0.0
        %311 = vmatpush1.msra.mxu0 0.0
        %312 = vmatprep.mubr.f32.mxu0 0.0
        %313 = vmatmul.mubr.f32.gmra.mrb[0].mxu0 %v213
        %v314 = vpop.f32.mrb[0].mxu0
        %v315 = vadd.f32 0.0, %v314
        %v316 = vpop.f32.mrb[0].mxu0
        %317 = vmatprep.mubr.f32.mxu0 0.0
        %318 = vmatmul.mubr.f32.gmra.mrb[0].mxu0 %v216
        %v319 = vpop.f32.mrb[0].mxu0
        %v320 = vadd.f32 0.0, %v319
        %v321 = vpop.f32.mrb[0].mxu0
        %322 = vmatprep.mubr.f32.mxu0 0.0
        %323 = vmatmul.mubr.f32.gmra.mrb[0].mxu0 %v219
        %v324 = vpop.f32.mrb[0].mxu0
        %v325 = vadd.f32 0.0, %v324
        %v326 = vpop.f32.mrb[0].mxu0
        %327 = vmatprep.mubr.f32.mxu0 0.0
        %328 = vmatmul.mubr.f32.gmra.mrb[0].mxu0 %v222
        %v329 = vpop.f32.mrb[0].mxu0
        %v330 = vadd.f32 0.0, %v329
        %v331 = vpop.f32.mrb[0].mxu0
        %332 = vmatprep.mubr.f32.mxu0 0.0
        %333 = vmatmul.mubr.f32.gmra.mrb[0].mxu0 %v225
        %v334 = vpop.f32.mrb[0].mxu0
        %v335 = vadd.f32 0.0, %v334
        %v336 = vpop.f32.mrb[0].mxu0
        %337 = vmatprep.mubr.f32.mxu0 0.0
        %338 = vmatmul.mubr.f32.gmra.mrb[0].mxu0 %v228
        %v339 = vpop.f32.mrb[0].mxu0
        %v340 = vadd.f32 0.0, %v339
        %v341 = vpop.f32.mrb[0].mxu0
        %342 = vmatprep.mubr.f32.mxu0 0.0
        %343 = vmatmul.mubr.f32.gmra.mrb[0].mxu0 %v231
        %v344 = vpop.f32.mrb[0].mxu0
        %v345 = vadd.f32 0.0, %v344
        %v346 = vpop.f32.mrb[0].mxu0
        %347 = vmatprep.mubr.f32.mxu0 0.0
        %348 = vmatmul.mubr.f32.gmra.mrb[0].mxu0 %v234
        %v349 = vpop.f32.mrb[0].mxu0
        %v350 = vadd.f32 0.0, %v349
        %v351 = vpop.f32.mrb[0].mxu0
        %352 = vmatprep.mubr.f32.mxu0 0.0
        %353 = vmatmul.mubr.f32.gmra.mrb[0].mxu0 %v237
        %v354 = vpop.f32.mrb[0].mxu0
        %v355 = vadd.f32 0.0, %v354
        %v356 = vpop.f32.mrb[0].mxu0
        %357 = vmatprep.mubr.f32.mxu0 0.0
        %358 = vmatmul.mubr.f32.gmra.mrb[0].mxu0 %v240
        %v359 = vpop.f32.mrb[0].mxu0
        %v360 = vadd.f32 0.0, %v359
        %v361 = vpop.f32.mrb[0].mxu0
        %362 = vmatprep.mubr.f32.mxu0 0.0
        %363 = vmatmul.mubr.f32.gmra.mrb[0].mxu0 %v243
        %v364 = vpop.f32.mrb[0].mxu0
        %v365 = vadd.f32 0.0, %v364
        %v366 = vpop.f32.mrb[0].mxu0
        %367 = vmatprep.mubr.f32.mxu0 0.0
        %368 = vmatmul.mubr.f32.gmra.mrb[0].mxu0 %v246
        %v369 = vpop.f32.mrb[0].mxu0
        %v370 = vadd.f32 0.0, %v369
        %v371 = vpop.f32.mrb[0].mxu0
        %372 = vdwg.mxu0
        %v373 = vld [vmem:[%s1] sm:$0xff]
        %v374 = vld [vmem:[%s1 + $0x8] sm:$0x7]
        %vm375 = vcmask 130048
        %v377 = vsel %vm375, %v373, 0
        %v380 = vsel %vm375, %v374, 0
        %382 = vmatprep.subr.mxu0 0.0
        %383 = vmatpush1.msra.mxu0 %v315
        %384 = vmatprep.subr.mxu0 0.0
        %385 = vmatpush1.msra.mxu0 %v320
        %386 = vmatprep.subr.mxu0 0.0
        %387 = vmatpush1.msra.mxu0 0.0
        %388 = vmatprep.subr.mxu0 0.0
        %389 = vmatpush1.msra.mxu0 0.0
        %390 = vmatprep.subr.mxu0 0.0
        %391 = vmatpush1.msra.mxu0 0.0
        %392 = vmatprep.subr.mxu0 0.0
        %393 = vmatpush1.msra.mxu0 0.0
        %394 = vmatprep.subr.mxu0 0.0
        %395 = vmatpush1.msra.mxu0 0.0
        %396 = vmatprep.subr.mxu0 0.0
        %397 = vmatpush1.msra.mxu0 0.0
        %398 = vmatprep.subr.mxu0 0.0
        %399 = vmatpush1.msra.mxu0 0.0
        %400 = vmatprep.subr.mxu0 0.0
        %401 = vmatpush1.msra.mxu0 0.0
        %402 = vmatprep.subr.mxu0 0.0
        %403 = vmatpush1.msra.mxu0 0.0
        %404 = vmatprep.subr.mxu0 0.0
        %405 = vmatpush1.msra.mxu0 0.0
        %406 = vmatprep.subr.mxu0 0.0
        %407 = vmatpush1.msra.mxu0 0.0
        %408 = vmatprep.subr.mxu0 0.0
        %409 = vmatpush1.msra.mxu0 0.0
        %410 = vmatprep.subr.mxu0 0.0
        %411 = vmatpush1.msra.mxu0 0.0
        %412 = vmatprep.subr.mxu0 0.0
        %413 = vmatpush1.msra.mxu0 0.0
        %414 = vmatprep.subr.mxu0 0.0
        %415 = vmatpush1.msra.mxu0 0.0
        %416 = vmatprep.subr.mxu0 0.0
        %417 = vmatpush1.msra.mxu0 0.0
        %418 = vmatprep.subr.mxu0 0.0
        %419 = vmatpush1.msra.mxu0 0.0
        %420 = vmatprep.subr.mxu0 0.0
        %421 = vmatpush1.msra.mxu0 0.0
        %422 = vmatprep.subr.mxu0 0.0
        %423 = vmatpush1.msra.mxu0 0.0
        %424 = vmatprep.subr.mxu0 0.0
        %425 = vmatpush1.msra.mxu0 0.0
        %426 = vmatprep.subr.mxu0 0.0
        %427 = vmatpush1.msra.mxu0 0.0
        %428 = vmatprep.subr.mxu0 0.0
        %429 = vmatpush1.msra.mxu0 0.0
        %430 = vmatprep.subr.mxu0 0.0
        %431 = vmatpush1.msra.mxu0 0.0
        %432 = vmatprep.subr.mxu0 0.0
        %433 = vmatpush1.msra.mxu0 0.0
        %434 = vmatprep.subr.mxu0 0.0
        %435 = vmatpush1.msra.mxu0 0.0
        %436 = vmatprep.subr.mxu0 0.0
        %437 = vmatpush1.msra.mxu0 0.0
        %438 = vmatprep.subr.mxu0 0.0
        %439 = vmatpush1.msra.mxu0 0.0
        %440 = vmatprep.subr.mxu0 0.0
        %441 = vmatpush1.msra.mxu0 0.0
        %442 = vmatprep.subr.mxu0 0.0
        %443 = vmatpush1.msra.mxu0 0.0
        %444 = vmatprep.subr.mxu0 0.0
        %445 = vmatpush1.msra.mxu0 0.0
        %446 = vmatprep.mubr.f32.mxu0 0.0
        %447 = vmatmul.mubr.f32.gmra.mrb[0].mxu0 %v377
        %v448 = vpop.f32.mrb[0].mxu0
        %v449 = vadd.f32 0.0, %v448
        %v450 = vpop.f32.mrb[0].mxu0
        %451 = vmatprep.mubr.f32.mxu0 0.0
        %452 = vmatmul.mubr.f32.gmra.mrb[0].mxu0 %v380
        %v453 = vpop.f32.mrb[0].mxu0
        %v454 = vadd.f32 0.0, %v453
        %v455 = vpop.f32.mrb[0].mxu0
        %456 = vdwg.mxu0
        %457 = vmatprep.subr.mxu0 0.0
        %458 = vmatpush1.msra.mxu0 %v325
        %459 = vmatprep.subr.mxu0 0.0
        %460 = vmatpush1.msra.mxu0 %v330
        %461 = vmatprep.subr.mxu0 0.0
        %462 = vmatpush1.msra.mxu0 0.0
        %463 = vmatprep.subr.mxu0 0.0
        %464 = vmatpush1.msra.mxu0 0.0
        %465 = vmatprep.subr.mxu0 0.0
        %466 = vmatpush1.msra.mxu0 0.0
        %467 = vmatprep.subr.mxu0 0.0
        %468 = vmatpush1.msra.mxu0 0.0
        %469 = vmatprep.subr.mxu0 0.0
        %470 = vmatpush1.msra.mxu0 0.0
        %471 = vmatprep.subr.mxu0 0.0
        %472 = vmatpush1.msra.mxu0 0.0
        %473 = vmatprep.subr.mxu0 0.0
        %474 = vmatpush1.msra.mxu0 0.0
        %475 = vmatprep.subr.mxu0 0.0
        %476 = vmatpush1.msra.mxu0 0.0
        %477 = vmatprep.subr.mxu0 0.0
        %478 = vmatpush1.msra.mxu0 0.0
        %479 = vmatprep.subr.mxu0 0.0
        %480 = vmatpush1.msra.mxu0 0.0
        %481 = vmatprep.subr.mxu0 0.0
        %482 = vmatpush1.msra.mxu0 0.0
        %483 = vmatprep.subr.mxu0 0.0
        %484 = vmatpush1.msra.mxu0 0.0
        %485 = vmatprep.subr.mxu0 0.0
        %486 = vmatpush1.msra.mxu0 0.0
        %487 = vmatprep.subr.mxu0 0.0
        %488 = vmatpush1.msra.mxu0 0.0
        %489 = vmatprep.subr.mxu0 0.0
        %490 = vmatpush1.msra.mxu0 0.0
        %491 = vmatprep.subr.mxu0 0.0
        %492 = vmatpush1.msra.mxu0 0.0
        %493 = vmatprep.subr.mxu0 0.0
        %494 = vmatpush1.msra.mxu0 0.0
        %495 = vmatprep.subr.mxu0 0.0
        %496 = vmatpush1.msra.mxu0 0.0
        %497 = vmatprep.subr.mxu0 0.0
        %498 = vmatpush1.msra.mxu0 0.0
        %499 = vmatprep.subr.mxu0 0.0
        %500 = vmatpush1.msra.mxu0 0.0
        %501 = vmatprep.subr.mxu0 0.0
        %502 = vmatpush1.msra.mxu0 0.0
        %503 = vmatprep.subr.mxu0 0.0
        %504 = vmatpush1.msra.mxu0 0.0
        %505 = vmatprep.subr.mxu0 0.0
        %506 = vmatpush1.msra.mxu0 0.0
        %507 = vmatprep.subr.mxu0 0.0
        %508 = vmatpush1.msra.mxu0 0.0
        %509 = vmatprep.subr.mxu0 0.0
        %510 = vmatpush1.msra.mxu0 0.0
        %511 = vmatprep.subr.mxu0 0.0
        %512 = vmatpush1.msra.mxu0 0.0
        %513 = vmatprep.subr.mxu0 0.0
        %514 = vmatpush1.msra.mxu0 0.0
        %515 = vmatprep.subr.mxu0 0.0
        %516 = vmatpush1.msra.mxu0 0.0
        %517 = vmatprep.subr.mxu0 0.0
        %518 = vmatpush1.msra.mxu0 0.0
        %519 = vmatprep.subr.mxu0 0.0
        %520 = vmatpush1.msra.mxu0 0.0
        %521 = vmatprep.mubr.f32.mxu0 0.0
        %522 = vmatmul.mubr.f32.gmra.mrb[0].mxu0 %v377
        %v523 = vpop.f32.mrb[0].mxu0
        %v524 = vadd.f32 0.0, %v523
        %v525 = vpop.f32.mrb[0].mxu0
        %526 = vmatprep.mubr.f32.mxu0 0.0
        %527 = vmatmul.mubr.f32.gmra.mrb[0].mxu0 %v380
        %v528 = vpop.f32.mrb[0].mxu0
        %v529 = vadd.f32 0.0, %v528
        %v530 = vpop.f32.mrb[0].mxu0
        %531 = vdwg.mxu0
        %532 = vmatprep.subr.mxu0 0.0
        %533 = vmatpush1.msra.mxu0 %v335
        %534 = vmatprep.subr.mxu0 0.0
        %535 = vmatpush1.msra.mxu0 %v340
        %536 = vmatprep.subr.mxu0 0.0
        %537 = vmatpush1.msra.mxu0 0.0
        %538 = vmatprep.subr.mxu0 0.0
        %539 = vmatpush1.msra.mxu0 0.0
        %540 = vmatprep.subr.mxu0 0.0
        %541 = vmatpush1.msra.mxu0 0.0
        %542 = vmatprep.subr.mxu0 0.0
        %543 = vmatpush1.msra.mxu0 0.0
        %544 = vmatprep.subr.mxu0 0.0
        %545 = vmatpush1.msra.mxu0 0.0
        %546 = vmatprep.subr.mxu0 0.0
        %547 = vmatpush1.msra.mxu0 0.0
        %548 = vmatprep.subr.mxu0 0.0
        %549 = vmatpush1.msra.mxu0 0.0
        %550 = vmatprep.subr.mxu0 0.0
        %551 = vmatpush1.msra.mxu0 0.0
        %552 = vmatprep.subr.mxu0 0.0
        %553 = vmatpush1.msra.mxu0 0.0
        %554 = vmatprep.subr.mxu0 0.0
        %555 = vmatpush1.msra.mxu0 0.0
        %556 = vmatprep.subr.mxu0 0.0
        %557 = vmatpush1.msra.mxu0 0.0
        %558 = vmatprep.subr.mxu0 0.0
        %559 = vmatpush1.msra.mxu0 0.0
        %560 = vmatprep.subr.mxu0 0.0
        %561 = vmatpush1.msra.mxu0 0.0
        %562 = vmatprep.subr.mxu0 0.0
        %563 = vmatpush1.msra.mxu0 0.0
        %564 = vmatprep.subr.mxu0 0.0
        %565 = vmatpush1.msra.mxu0 0.0
        %566 = vmatprep.subr.mxu0 0.0
        %567 = vmatpush1.msra.mxu0 0.0
        %568 = vmatprep.subr.mxu0 0.0
        %569 = vmatpush1.msra.mxu0 0.0
        %570 = vmatprep.subr.mxu0 0.0
        %571 = vmatpush1.msra.mxu0 0.0
        %572 = vmatprep.subr.mxu0 0.0
        %573 = vmatpush1.msra.mxu0 0.0
        %574 = vmatprep.subr.mxu0 0.0
        %575 = vmatpush1.msra.mxu0 0.0
        %576 = vmatprep.subr.mxu0 0.0
        %577 = vmatpush1.msra.mxu0 0.0
        %578 = vmatprep.subr.mxu0 0.0
        %579 = vmatpush1.msra.mxu0 0.0
        %580 = vmatprep.subr.mxu0 0.0
        %581 = vmatpush1.msra.mxu0 0.0
        %582 = vmatprep.subr.mxu0 0.0
        %583 = vmatpush1.msra.mxu0 0.0
        %584 = vmatprep.subr.mxu0 0.0
        %585 = vmatpush1.msra.mxu0 0.0
        %586 = vmatprep.subr.mxu0 0.0
        %587 = vmatpush1.msra.mxu0 0.0
        %588 = vmatprep.subr.mxu0 0.0
        %589 = vmatpush1.msra.mxu0 0.0
        %590 = vmatprep.subr.mxu0 0.0
        %591 = vmatpush1.msra.mxu0 0.0
        %592 = vmatprep.subr.mxu0 0.0
        %593 = vmatpush1.msra.mxu0 0.0
        %594 = vmatprep.subr.mxu0 0.0
        %595 = vmatpush1.msra.mxu0 0.0
        %596 = vmatprep.mubr.f32.mxu0 0.0
        %597 = vmatmul.mubr.f32.gmra.mrb[0].mxu0 %v377
        %v598 = vpop.f32.mrb[0].mxu0
        %v599 = vadd.f32 0.0, %v598
        %v600 = vpop.f32.mrb[0].mxu0
        %601 = vmatprep.mubr.f32.mxu0 0.0
        %602 = vmatmul.mubr.f32.gmra.mrb[0].mxu0 %v380
        %v603 = vpop.f32.mrb[0].mxu0
        %v604 = vadd.f32 0.0, %v603
        %v605 = vpop.f32.mrb[0].mxu0
        %606 = vdwg.mxu0
        %607 = vmatprep.subr.mxu0 0.0
        %608 = vmatpush1.msra.mxu0 %v345
        %609 = vmatprep.subr.mxu0 0.0
        %610 = vmatpush1.msra.mxu0 %v350
        %611 = vmatprep.subr.mxu0 0.0
        %612 = vmatpush1.msra.mxu0 0.0
        %613 = vmatprep.subr.mxu0 0.0
        %614 = vmatpush1.msra.mxu0 0.0
        %615 = vmatprep.subr.mxu0 0.0
        %616 = vmatpush1.msra.mxu0 0.0
        %617 = vmatprep.subr.mxu0 0.0
        %618 = vmatpush1.msra.mxu0 0.0
        %619 = vmatprep.subr.mxu0 0.0
        %620 = vmatpush1.msra.mxu0 0.0
        %621 = vmatprep.subr.mxu0 0.0
        %622 = vmatpush1.msra.mxu0 0.0
        %623 = vmatprep.subr.mxu0 0.0
        %624 = vmatpush1.msra.mxu0 0.0
        %625 = vmatprep.subr.mxu0 0.0
        %626 = vmatpush1.msra.mxu0 0.0
        %627 = vmatprep.subr.mxu0 0.0
        %628 = vmatpush1.msra.mxu0 0.0
        %629 = vmatprep.subr.mxu0 0.0
        %630 = vmatpush1.msra.mxu0 0.0
        %631 = vmatprep.subr.mxu0 0.0
        %632 = vmatpush1.msra.mxu0 0.0
        %633 = vmatprep.subr.mxu0 0.0
        %634 = vmatpush1.msra.mxu0 0.0
        %635 = vmatprep.subr.mxu0 0.0
        %636 = vmatpush1.msra.mxu0 0.0
        %637 = vmatprep.subr.mxu0 0.0
        %638 = vmatpush1.msra.mxu0 0.0
        %639 = vmatprep.subr.mxu0 0.0
        %640 = vmatpush1.msra.mxu0 0.0
        %641 = vmatprep.subr.mxu0 0.0
        %642 = vmatpush1.msra.mxu0 0.0
        %643 = vmatprep.subr.mxu0 0.0
        %644 = vmatpush1.msra.mxu0 0.0
        %645 = vmatprep.subr.mxu0 0.0
        %646 = vmatpush1.msra.mxu0 0.0
        %647 = vmatprep.subr.mxu0 0.0
        %648 = vmatpush1.msra.mxu0 0.0
        %649 = vmatprep.subr.mxu0 0.0
        %650 = vmatpush1.msra.mxu0 0.0
        %651 = vmatprep.subr.mxu0 0.0
        %652 = vmatpush1.msra.mxu0 0.0
        %653 = vmatprep.subr.mxu0 0.0
        %654 = vmatpush1.msra.mxu0 0.0
        %655 = vmatprep.subr.mxu0 0.0
        %656 = vmatpush1.msra.mxu0 0.0
        %657 = vmatprep.subr.mxu0 0.0
        %658 = vmatpush1.msra.mxu0 0.0
        %659 = vmatprep.subr.mxu0 0.0
        %660 = vmatpush1.msra.mxu0 0.0
        %661 = vmatprep.subr.mxu0 0.0
        %662 = vmatpush1.msra.mxu0 0.0
        %663 = vmatprep.subr.mxu0 0.0
        %664 = vmatpush1.msra.mxu0 0.0
        %665 = vmatprep.subr.mxu0 0.0
        %666 = vmatpush1.msra.mxu0 0.0
        %667 = vmatprep.subr.mxu0 0.0
        %668 = vmatpush1.msra.mxu0 0.0
        %669 = vmatprep.subr.mxu0 0.0
        %670 = vmatpush1.msra.mxu0 0.0
        %671 = vmatprep.mubr.f32.mxu0 0.0
        %672 = vmatmul.mubr.f32.gmra.mrb[0].mxu0 %v377
        %v673 = vpop.f32.mrb[0].mxu0
        %v674 = vadd.f32 0.0, %v673
        %v675 = vpop.f32.mrb[0].mxu0
        %676 = vmatprep.mubr.f32.mxu0 0.0
        %677 = vmatmul.mubr.f32.gmra.mrb[0].mxu0 %v380
        %v678 = vpop.f32.mrb[0].mxu0
        %v679 = vadd.f32 0.0, %v678
        %v680 = vpop.f32.mrb[0].mxu0
        %681 = vdwg.mxu0
        %682 = vmatprep.subr.mxu0 0.0
        %683 = vmatpush1.msra.mxu0 %v355
        %684 = vmatprep.subr.mxu0 0.0
        %685 = vmatpush1.msra.mxu0 %v360
        %686 = vmatprep.subr.mxu0 0.0
        %687 = vmatpush1.msra.mxu0 0.0
        %688 = vmatprep.subr.mxu0 0.0
        %689 = vmatpush1.msra.mxu0 0.0
        %690 = vmatprep.subr.mxu0 0.0
        %691 = vmatpush1.msra.mxu0 0.0
        %692 = vmatprep.subr.mxu0 0.0
        %693 = vmatpush1.msra.mxu0 0.0
        %694 = vmatprep.subr.mxu0 0.0
        %695 = vmatpush1.msra.mxu0 0.0
        %696 = vmatprep.subr.mxu0 0.0
        %697 = vmatpush1.msra.mxu0 0.0
        %698 = vmatprep.subr.mxu0 0.0
        %699 = vmatpush1.msra.mxu0 0.0
        %700 = vmatprep.subr.mxu0 0.0
        %701 = vmatpush1.msra.mxu0 0.0
        %702 = vmatprep.subr.mxu0 0.0
        %703 = vmatpush1.msra.mxu0 0.0
        %704 = vmatprep.subr.mxu0 0.0
        %705 = vmatpush1.msra.mxu0 0.0
        %706 = vmatprep.subr.mxu0 0.0
        %707 = vmatpush1.msra.mxu0 0.0
        %708 = vmatprep.subr.mxu0 0.0
        %709 = vmatpush1.msra.mxu0 0.0
        %710 = vmatprep.subr.mxu0 0.0
        %711 = vmatpush1.msra.mxu0 0.0
        %712 = vmatprep.subr.mxu0 0.0
        %713 = vmatpush1.msra.mxu0 0.0
        %714 = vmatprep.subr.mxu0 0.0
        %715 = vmatpush1.msra.mxu0 0.0
        %716 = vmatprep.subr.mxu0 0.0
        %717 = vmatpush1.msra.mxu0 0.0
        %718 = vmatprep.subr.mxu0 0.0
        %719 = vmatpush1.msra.mxu0 0.0
        %720 = vmatprep.subr.mxu0 0.0
        %721 = vmatpush1.msra.mxu0 0.0
        %722 = vmatprep.subr.mxu0 0.0
        %723 = vmatpush1.msra.mxu0 0.0
        %724 = vmatprep.subr.mxu0 0.0
        %725 = vmatpush1.msra.mxu0 0.0
        %726 = vmatprep.subr.mxu0 0.0
        %727 = vmatpush1.msra.mxu0 0.0
        %728 = vmatprep.subr.mxu0 0.0
        %729 = vmatpush1.msra.mxu0 0.0
        %730 = vmatprep.subr.mxu0 0.0
        %731 = vmatpush1.msra.mxu0 0.0
        %732 = vmatprep.subr.mxu0 0.0
        %733 = vmatpush1.msra.mxu0 0.0
        %734 = vmatprep.subr.mxu0 0.0
        %735 = vmatpush1.msra.mxu0 0.0
        %736 = vmatprep.subr.mxu0 0.0
        %737 = vmatpush1.msra.mxu0 0.0
        %738 = vmatprep.subr.mxu0 0.0
        %739 = vmatpush1.msra.mxu0 0.0
        %740 = vmatprep.subr.mxu0 0.0
        %741 = vmatpush1.msra.mxu0 0.0
        %742 = vmatprep.subr.mxu0 0.0
        %743 = vmatpush1.msra.mxu0 0.0
        %744 = vmatprep.subr.mxu0 0.0
        %745 = vmatpush1.msra.mxu0 0.0
        %746 = vmatprep.mubr.f32.mxu0 0.0
        %747 = vmatmul.mubr.f32.gmra.mrb[0].mxu0 %v377
        %v748 = vpop.f32.mrb[0].mxu0
        %v749 = vadd.f32 0.0, %v748
        %v750 = vpop.f32.mrb[0].mxu0
        %751 = vmatprep.mubr.f32.mxu0 0.0
        %752 = vmatmul.mubr.f32.gmra.mrb[0].mxu0 %v380
        %v753 = vpop.f32.mrb[0].mxu0
        %v754 = vadd.f32 0.0, %v753
        %v755 = vpop.f32.mrb[0].mxu0
        %756 = vdwg.mxu0
        %757 = vmatprep.subr.mxu0 0.0
        %758 = vmatpush1.msra.mxu0 %v365
        %759 = vmatprep.subr.mxu0 0.0
        %760 = vmatpush1.msra.mxu0 %v370
        %761 = vmatprep.subr.mxu0 0.0
        %762 = vmatpush1.msra.mxu0 0.0
        %763 = vmatprep.subr.mxu0 0.0
        %764 = vmatpush1.msra.mxu0 0.0
        %765 = vmatprep.subr.mxu0 0.0
        %766 = vmatpush1.msra.mxu0 0.0
        %767 = vmatprep.subr.mxu0 0.0
        %768 = vmatpush1.msra.mxu0 0.0
        %769 = vmatprep.subr.mxu0 0.0
        %770 = vmatpush1.msra.mxu0 0.0
        %771 = vmatprep.subr.mxu0 0.0
        %772 = vmatpush1.msra.mxu0 0.0
        %773 = vmatprep.subr.mxu0 0.0
        %774 = vmatpush1.msra.mxu0 0.0
        %775 = vmatprep.subr.mxu0 0.0
        %776 = vmatpush1.msra.mxu0 0.0
        %777 = vmatprep.subr.mxu0 0.0
        %778 = vmatpush1.msra.mxu0 0.0
        %779 = vmatprep.subr.mxu0 0.0
        %780 = vmatpush1.msra.mxu0 0.0
        %781 = vmatprep.subr.mxu0 0.0
        %782 = vmatpush1.msra.mxu0 0.0
        %783 = vmatprep.subr.mxu0 0.0
        %784 = vmatpush1.msra.mxu0 0.0
        %785 = vmatprep.subr.mxu0 0.0
        %786 = vmatpush1.msra.mxu0 0.0
        %787 = vmatprep.subr.mxu0 0.0
        %788 = vmatpush1.msra.mxu0 0.0
        %789 = vmatprep.subr.mxu0 0.0
        %790 = vmatpush1.msra.mxu0 0.0
        %791 = vmatprep.subr.mxu0 0.0
        %792 = vmatpush1.msra.mxu0 0.0
        %793 = vmatprep.subr.mxu0 0.0
        %794 = vmatpush1.msra.mxu0 0.0
        %795 = vmatprep.subr.mxu0 0.0
        %796 = vmatpush1.msra.mxu0 0.0
        %797 = vmatprep.subr.mxu0 0.0
        %798 = vmatpush1.msra.mxu0 0.0
        %799 = vmatprep.subr.mxu0 0.0
        %800 = vmatpush1.msra.mxu0 0.0
        %801 = vmatprep.subr.mxu0 0.0
        %802 = vmatpush1.msra.mxu0 0.0
        %803 = vmatprep.subr.mxu0 0.0
        %804 = vmatpush1.msra.mxu0 0.0
        %805 = vmatprep.subr.mxu0 0.0
        %806 = vmatpush1.msra.mxu0 0.0
        %807 = vmatprep.subr.mxu0 0.0
        %808 = vmatpush1.msra.mxu0 0.0
        %809 = vmatprep.subr.mxu0 0.0
        %810 = vmatpush1.msra.mxu0 0.0
        %811 = vmatprep.subr.mxu0 0.0
        %812 = vmatpush1.msra.mxu0 0.0
        %813 = vmatprep.subr.mxu0 0.0
        %814 = vmatpush1.msra.mxu0 0.0
        %815 = vmatprep.subr.mxu0 0.0
        %816 = vmatpush1.msra.mxu0 0.0
        %817 = vmatprep.subr.mxu0 0.0
        %818 = vmatpush1.msra.mxu0 0.0
        %819 = vmatprep.subr.mxu0 0.0
        %820 = vmatpush1.msra.mxu0 0.0
        %821 = vmatprep.mubr.f32.mxu0 0.0
        %822 = vmatmul.mubr.f32.gmra.mrb[0].mxu0 %v377
        %v823 = vpop.f32.mrb[0].mxu0
        %v824 = vadd.f32 0.0, %v823
        %v825 = vpop.f32.mrb[0].mxu0
        %826 = vmatprep.mubr.f32.mxu0 0.0
        %827 = vmatmul.mubr.f32.gmra.mrb[0].mxu0 %v380
        %v828 = vpop.f32.mrb[0].mxu0
        %v829 = vadd.f32 0.0, %v828
        %v830 = vpop.f32.mrb[0].mxu0
        %831 = vdwg.mxu0
        %832 = vst.msk [vmem:[%s194] sm:$0xff] %vm375, %v449
        %vm833 = vcmask 124928
        %834 = vst.msk [vmem:[%s194 + $0x8] sm:$0x7] %vm833, %v454
        %835 = vst.msk [vmem:[%s194 + $0x10] sm:$0xff] %vm375, %v524
        %836 = vst.msk [vmem:[%s194 + $0x18] sm:$0x7] %vm833, %v529
        %837 = vst.msk [vmem:[%s194 + $0x20] sm:$0xff] %vm375, %v599
        %838 = vst.msk [vmem:[%s194 + $0x28] sm:$0x7] %vm833, %v604
        %839 = vst.msk [vmem:[%s194 + $0x30] sm:$0xff] %vm375, %v674
        %840 = vst.msk [vmem:[%s194 + $0x38] sm:$0x7] %vm833, %v679
        %841 = vst.msk [vmem:[%s194 + $0x40] sm:$0xff] %vm375, %v749
        %842 = vst.msk [vmem:[%s194 + $0x48] sm:$0x7] %vm833, %v754
        %843 = vst.msk [vmem:[%s194 + $0x50] sm:$0xff] %vm375, %v824
        %844 = vst.msk [vmem:[%s194 + $0x58] sm:$0x7] %vm833, %v829
        %s845 = smul.u32 6, %s17
        %p846 = scmp.lt.s32.totalorder %s845, 11
        %s847 = scalar_select %p846, %s845, 11
        %s848 = smul.addr %s847, 2
        %s849 = smul.addr %s848, 8
        %s850 = scalar_lea.vmem %s3, %s849
        // Predicated region
        $region37: #{tpu_custom_call.1} parent=31 // pred_check
          %p851 = pneg %p103
        $region38: #{tpu_custom_call.1} parent=31 // pred_check_branch
          %853 = sbr.rel (%p851) target = $region40
        $region39: #{tpu_custom_call.1} parent=31 // pred_region
          %s854 = smul.u32 6, %s17
        $region40: #{tpu_custom_call.1} parent=31 // pred_fallthru
          _
      $region32: #{tpu_custom_call.1} parent=5 // pred_fallthru
        _
      %p855 = scmp.le.s32.totalorder 2, %s12
      // Predicated region
      $region41: #{tpu_custom_call.1} parent=5 // pred_check
        %p856 = pneg %p855
      $region42: #{tpu_custom_call.1} parent=5 // pred_check_branch
        %858 = sbr.rel (%p856) target = $region44
      $region43: #{tpu_custom_call.1} parent=5 // pred_region
        %s859 = ssub.s32 %s12, 2
        // Predicated region
        $region45: #{tpu_custom_call.1} parent=43 // pred_check
          %p860 = pneg %p109
        $region46: #{tpu_custom_call.1} parent=43 // pred_check_branch
          %862 = sbr.rel (%p860) target = $region48
        $region47: #{tpu_custom_call.1} parent=43 // pred_region
          %s863 = smul.u32 6, %s18
          %p864 = scmp.lt.s32.totalorder %s863, 11
          %s865 = scalar_select %p864, %s863, 11
          %s866 = smul.addr %s865, 2
          %s867 = smul.addr %s866, 8
          %s868 = scalar_lea.vmem %s3, %s867
        $region48: #{tpu_custom_call.1} parent=43 // pred_fallthru
          _
      $region44: #{tpu_custom_call.1} parent=5 // pred_fallthru
        _
    $region6: #{tpu_custom_call.1} parent=1 // loop_footer
      %s16 = sadd.s32 1, %s12
    $region7: #{tpu_custom_call.1} parent=1 // loop_footer_branch
      %11 = sbr.rel target = $region3
    $region8: #{tpu_custom_call.1} parent=1 // loop_exit
      _
    %869 = vsyncpa [#allocation3], 1
    %s870 = scalar_lea.sflag [#allocation3], 1
    %871 = vsyncpa %s870, 1

</llo_original>
